<compile_context>
chip_gen: v5e
topology: v5e:2x2
jax: 0.10.0
libtpu: 0.0.40
codegen_flags: <defaults>
</compile_context>

<pallas_src>
import functools

import jax
import jax.numpy as jnp
from jax.experimental import pallas as pl
from jax.experimental.pallas import tpu as pltpu


def _activation_dtype():
    """bf16 activations on chips with bf16 VPU/EUP (v6e/v7x), f32 otherwise."""
    try:
        kind = jax.devices()[0].device_kind.lower()
    except Exception:
        return jnp.float32
    if any(tag in kind for tag in ("v6", "v7", "7x")):
        return jnp.bfloat16
    return jnp.float32


def _dreamer_kernel(s_ref, a_ref, w1s_ref, w1a_ref, b1_ref,
                    w2_ref, b2_ref, w3_ref, b3_ref, o_ref, *, act_dtype):
    sT = s_ref[...]                          # [S, TB] f32 (feature-major)
    aT = a_ref[...]                          # [A, TB] f32
    S = sT.shape[0]
    A = aT.shape[0]

    # fc1: K = S + A is tiny -> outer-product MACs on the VPU (frees the MXU
    # slot, no f32-matmul emulation on v5e). Bias added last, in f32.
    w1s = w1s_ref[...]                       # [H, S] f32
    w1a = w1a_ref[...]                       # [H, A] f32
    z1 = w1s[:, 0:1] * sT[0:1, :]            # [H, TB] f32
    for k in range(1, S):
        z1 = z1 + w1s[:, k:k + 1] * sT[k:k + 1, :]
    for k in range(A):
        z1 = z1 + w1a[:, k:k + 1] * aT[k:k + 1, :]
    z1 = z1 + b1_ref[...]
    h1 = jax.nn.sigmoid(z1.astype(act_dtype))        # bf16 on v6e/v7x -> 1/2 EUP pushes

    # fc2: bf16 MXU operands, f32 accumulation; bias add in f32.
    z2 = jnp.dot(w2_ref[...], h1.astype(jnp.bfloat16),
                 preferred_element_type=jnp.float32) + b2_ref[...]
    h2 = jax.nn.sigmoid(z2.astype(act_dtype))

    # fc3 + tanh + residual. Output [S, TB]: batch in lanes -> lane-dense store;
    # tanh/residual only touch ceil(S/8)-sublane vregs.
    z3 = jnp.dot(w3_ref[...], h2.astype(jnp.bfloat16),
                 preferred_element_type=jnp.float32) + b3_ref[...]
    o_ref[...] = (jnp.tanh(z3) + sT).astype(o_ref.dtype)


def _round_up(x, m):
    return ((x + m - 1) // m) * m


def _pick_batch_tile(batch, max_tb=2048):
    if batch < 256:
        return batch                         # single full-extent block along batch
    # Tiled path: lanes must be a multiple of 128; keep >= 2 grid steps so the
    # "parallel" batch axis can shard across both v7x TensorCores.
    return min(max_tb, _round_up(pl.cdiv(batch, 2), 128))


@jax.jit
def dreamer_forward_t(state_t, action_t, prepared_params):
    """Feature-major entry: state_t [S, B], action_t [A, B] -> next_state_t [S, B]."""
    w1s, w1a, b1, w2, b2, w3, b3 = prepared_params
    S, B = state_t.shape
    A = action_t.shape[0]
    H = w2.shape[0]
    TB = _pick_batch_tile(B)
    act_dtype = _activation_dtype()

    def batch_spec(d):
        return pl.BlockSpec((d, TB), lambda i: (0, i))

    def const_spec(shape):
        return pl.BlockSpec(shape, lambda i: (0, 0))     # VMEM-resident across grid

    kernel = functools.partial(_dreamer_kernel, act_dtype=act_dtype)

    return pl.pallas_call(
        kernel,
        out_shape=jax.ShapeDtypeStruct((S, B), jnp.float32),
        grid=(pl.cdiv(B, TB),),
        in_specs=[
            batch_spec(S),        # state^T
            batch_spec(A),        # action^T
            const_spec((H, S)),   # W1_s (f32, VPU)
            const_spec((H, A)),   # W1_a (f32, VPU)
            const_spec((H, 1)),   # b1
            const_spec((H, H)),   # W2 (bf16, MXU)
            const_spec((H, 1)),   # b2
            const_spec((S, H)),   # W3 (bf16, MXU)
            const_spec((S, 1)),   # b3
        ],
        out_specs=batch_spec(S),
        compiler_params=pltpu.CompilerParams(
            dimension_semantics=("parallel",)),
    )(state_t, action_t, w1s, w1a, b1, w2, b2, w3, b3)


@jax.jit
def dreamer_forward(state, action, prepared_params):
    """Batch-major (PyTorch-layout) convenience entry: [B,S], [B,A] -> [B,S]."""
    return dreamer_forward_t(state.T, action.T, prepared_params).T


def init_params(key, state_size, action_size, hidden=128):
    """Deterministic init matching nn.Linear shapes ([out, in] weights, f32)."""
    ks = jax.random.split(key, 6)
    d_in = state_size + action_size

    def lin(kw, kb, fan_in, fan_out):
        bound = 1.0 / (fan_in ** 0.5)
        w = jax.random.uniform(kw, (fan_out, fan_in), jnp.float32, -bound, bound)
        b = jax.random.uniform(kb, (fan_out,), jnp.float32, -bound, bound)
        return w, b

    w1, b1 = lin(ks[0], ks[1], d_in, hidden)
    w2, b2 = lin(ks[2], ks[3], hidden, hidden)
    w3, b3 = lin(ks[4], ks[5], hidden, state_size)
    return (w1, b1, w2, b2, w3, b3)


def prepare_params(params, state_size):
    """One-time prep: split W1 (fuses the concat), column-biases, bf16 MXU weights."""
    w1, b1, w2, b2, w3, b3 = params
    return (w1[:, :state_size],              # W1_s [H, S] f32
            w1[:, state_size:],              # W1_a [H, A] f32
            b1.reshape(-1, 1),               # [H, 1]
            w2.astype(jnp.bfloat16),         # [H, H] bf16
            b2.reshape(-1, 1),               # [H, 1]
            w3.astype(jnp.bfloat16),         # [S, H] bf16
            b3.reshape(-1, 1))               # [S, 1]


if __name__ == "__main__":
    key = jax.random.PRNGKey(0)
    k_state, k_action, k_params = jax.random.split(key, 3)

    batch = 8
    state_size = 3    # pendulum observation dim
    action_size = 1   # pendulum action dim
    hidden = 128

    state = jax.random.normal(k_state, (batch, state_size), jnp.float32)
    action = jax.random.normal(k_action, (batch, action_size), jnp.float32)
    params = init_params(k_params, state_size, action_size, hidden)
    prepared = prepare_params(params, state_size)

    out = dreamer_forward(state, action, prepared)
    jax.block_until_ready(out)
    assert out.shape == (batch, state_size)

    # Reference 1: identical reduced-precision math in plain JAX (feature-major).
    act_dtype = _activation_dtype()
    w1s, w1a, b1c, w2_bf, b2c, w3_bf, b3c = prepared
    sT, aT = state.T, action.T
    z1 = w1s[:, 0:1] * sT[0:1, :]
    for k in range(1, state_size):
        z1 = z1 + w1s[:, k:k + 1] * sT[k:k + 1, :]
    for k in range(action_size):
        z1 = z1 + w1a[:, k:k + 1] * aT[k:k + 1, :]
    z1 = z1 + b1c
    h1 = jax.nn.sigmoid(z1.astype(act_dtype))
    z2 = jnp.dot(w2_bf, h1.astype(jnp.bfloat16),
                 preferred_element_type=jnp.float32) + b2c
    h2 = jax.nn.sigmoid(z2.astype(act_dtype))
    z3 = jnp.dot(w3_bf, h2.astype(jnp.bfloat16),
                 preferred_element_type=jnp.float32) + b3c
    ref_bf = (jnp.tanh(z3) + sT).T
    assert jnp.allclose(out, ref_bf, atol=1e-2, rtol=1e-2), "bf16-path mismatch"

    # Reference 2: full-f32 PyTorch-equivalent math (loose tolerance for bf16 path).
    w1, b1f, w2f, b2f, w3f, b3f = params
    hp = jax.lax.Precision.HIGHEST
    x = jnp.concatenate([state, action], axis=1)
    h1f = jax.nn.sigmoid(jnp.dot(x, w1.T, precision=hp) + b1f)
    h2f = jax.nn.sigmoid(jnp.dot(h1f, w2f.T, precision=hp) + b2f)
    ref_f32 = jnp.tanh(jnp.dot(h2f, w3f.T, precision=hp) + b3f) + state
    assert jnp.allclose(out, ref_f32, atol=5e-2, rtol=5e-2), "f32 reference mismatch"

    print("KERNEL_OK")
</pallas_src>

<mosaic_0001>
module attributes {stable_mosaic.version = 11 : i64} {
  func.func @_dreamer_kernel(%arg0: i32, %arg1: memref<3x8xf32, #tpu.memory_space<vmem>>, %arg2: memref<1x8xf32, #tpu.memory_space<vmem>>, %arg3: memref<128x3xf32, #tpu.memory_space<vmem>>, %arg4: memref<128x1xf32, #tpu.memory_space<vmem>>, %arg5: memref<128x1xf32, #tpu.memory_space<vmem>>, %arg6: memref<128x128xbf16, #tpu.memory_space<vmem>>, %arg7: memref<128x1xf32, #tpu.memory_space<vmem>>, %arg8: memref<3x128xbf16, #tpu.memory_space<vmem>>, %arg9: memref<3x1xf32, #tpu.memory_space<vmem>>, %arg10: memref<3x8xf32, #tpu.memory_space<vmem>>) attributes {dimension_semantics = [#tpu.dimension_semantics<parallel>], iteration_bounds = array<i64: 1>, scalar_prefetch = 0 : i64, scratch_operands = 0 : i64, tpu.core_type = #tpu.core_type<tc>, window_params = [{transform_indices = @transform_0, window_bounds = array<i64: 3, 8>}, {transform_indices = @transform_1, window_bounds = array<i64: 1, 8>}, {pipeline_mode = #tpu.pipeline_mode<synchronous>, transform_indices = @transform_2, window_bounds = array<i64: 128, 3>}, {pipeline_mode = #tpu.pipeline_mode<synchronous>, transform_indices = @transform_3, window_bounds = array<i64: 128, 1>}, {pipeline_mode = #tpu.pipeline_mode<synchronous>, transform_indices = @transform_4, window_bounds = array<i64: 128, 1>}, {pipeline_mode = #tpu.pipeline_mode<synchronous>, transform_indices = @transform_5, window_bounds = array<i64: 128, 128>}, {pipeline_mode = #tpu.pipeline_mode<synchronous>, transform_indices = @transform_6, window_bounds = array<i64: 128, 1>}, {pipeline_mode = #tpu.pipeline_mode<synchronous>, transform_indices = @transform_7, window_bounds = array<i64: 3, 128>}, {pipeline_mode = #tpu.pipeline_mode<synchronous>, transform_indices = @transform_8, window_bounds = array<i64: 3, 1>}, {transform_indices = @transform_9, window_bounds = array<i64: 3, 8>}]} {
    %c0 = arith.constant 0 : index
    %c0_0 = arith.constant 0 : index
    %0 = vector.load %arg1[%c0, %c0_0] : memref<3x8xf32, #tpu.memory_space<vmem>>, vector<3x8xf32>
    %c0_1 = arith.constant 0 : index
    %c0_2 = arith.constant 0 : index
    %1 = vector.load %arg2[%c0_1, %c0_2] : memref<1x8xf32, #tpu.memory_space<vmem>>, vector<1x8xf32>
    %c0_3 = arith.constant 0 : index
    %c0_4 = arith.constant 0 : index
    %2 = vector.load %arg3[%c0_3, %c0_4] : memref<128x3xf32, #tpu.memory_space<vmem>>, vector<128x3xf32>
    %c0_5 = arith.constant 0 : index
    %c0_6 = arith.constant 0 : index
    %3 = vector.load %arg4[%c0_5, %c0_6] : memref<128x1xf32, #tpu.memory_space<vmem>>, vector<128x1xf32>
    %4 = vector.extract_strided_slice %2 {offsets = [0, 0], sizes = [128, 1], strides = [1, 1]} : vector<128x3xf32> to vector<128x1xf32>
    %5 = vector.extract_strided_slice %0 {offsets = [0, 0], sizes = [1, 8], strides = [1, 1]} : vector<3x8xf32> to vector<1x8xf32>
    %6 = vector.broadcast %4 : vector<128x1xf32> to vector<128x8xf32>
    %7 = vector.broadcast %5 : vector<1x8xf32> to vector<128x8xf32>
    %8 = arith.mulf %6, %7 : vector<128x8xf32>
    %9 = vector.extract_strided_slice %2 {offsets = [0, 1], sizes = [128, 1], strides = [1, 1]} : vector<128x3xf32> to vector<128x1xf32>
    %10 = vector.extract_strided_slice %0 {offsets = [1, 0], sizes = [1, 8], strides = [1, 1]} : vector<3x8xf32> to vector<1x8xf32>
    %11 = vector.broadcast %9 : vector<128x1xf32> to vector<128x8xf32>
    %12 = vector.broadcast %10 : vector<1x8xf32> to vector<128x8xf32>
    %13 = arith.mulf %11, %12 : vector<128x8xf32>
    %14 = arith.addf %8, %13 : vector<128x8xf32>
    %15 = vector.extract_strided_slice %2 {offsets = [0, 2], sizes = [128, 1], strides = [1, 1]} : vector<128x3xf32> to vector<128x1xf32>
    %16 = vector.extract_strided_slice %0 {offsets = [2, 0], sizes = [1, 8], strides = [1, 1]} : vector<3x8xf32> to vector<1x8xf32>
    %17 = vector.broadcast %15 : vector<128x1xf32> to vector<128x8xf32>
    %18 = vector.broadcast %16 : vector<1x8xf32> to vector<128x8xf32>
    %19 = arith.mulf %17, %18 : vector<128x8xf32>
    %20 = arith.addf %14, %19 : vector<128x8xf32>
    %21 = vector.broadcast %3 : vector<128x1xf32> to vector<128x8xf32>
    %22 = vector.broadcast %1 : vector<1x8xf32> to vector<128x8xf32>
    %23 = arith.mulf %21, %22 : vector<128x8xf32>
    %24 = arith.addf %20, %23 : vector<128x8xf32>
    %c0_7 = arith.constant 0 : index
    %c0_8 = arith.constant 0 : index
    %25 = vector.load %arg5[%c0_7, %c0_8] : memref<128x1xf32, #tpu.memory_space<vmem>>, vector<128x1xf32>
    %26 = vector.broadcast %25 : vector<128x1xf32> to vector<128x8xf32>
    %27 = arith.addf %24, %26 : vector<128x8xf32>
    %28 = arith.negf %27 : vector<128x8xf32>
    %29 = math.exp %28 : vector<128x8xf32>
    %cst = arith.constant 1.000000e+00 : f32
    %30 = vector.broadcast %cst : f32 to vector<128x8xf32>
    %31 = arith.addf %30, %29 : vector<128x8xf32>
    %32 = arith.divf %30, %31 : vector<128x8xf32>
    %c0_9 = arith.constant 0 : index
    %c0_10 = arith.constant 0 : index
    %33 = vector.load %arg6[%c0_9, %c0_10] : memref<128x128xbf16, #tpu.memory_space<vmem>>, vector<128x128xbf16>
    %34 = arith.truncf %32 : vector<128x8xf32> to vector<128x8xbf16>
    %cst_11 = arith.constant dense<0.000000e+00> : vector<128x8xf32>
    %35 = tpu.matmul %33, %34, %cst_11 {dimension_numbers = #tpu.dot_dimension_numbers<[1], [0], [0], [1], [0, 0, 1, 1], [], []>} : vector<128x128xbf16>, vector<128x8xbf16>, vector<128x8xf32> -> vector<128x8xf32>
    %c0_12 = arith.constant 0 : index
    %c0_13 = arith.constant 0 : index
    %36 = vector.load %arg7[%c0_12, %c0_13] : memref<128x1xf32, #tpu.memory_space<vmem>>, vector<128x1xf32>
    %37 = vector.broadcast %36 : vector<128x1xf32> to vector<128x8xf32>
    %38 = arith.addf %35, %37 : vector<128x8xf32>
    %39 = arith.negf %38 : vector<128x8xf32>
    %40 = math.exp %39 : vector<128x8xf32>
    %cst_14 = arith.constant 1.000000e+00 : f32
    %41 = vector.broadcast %cst_14 : f32 to vector<128x8xf32>
    %42 = arith.addf %41, %40 : vector<128x8xf32>
    %43 = arith.divf %41, %42 : vector<128x8xf32>
    %c0_15 = arith.constant 0 : index
    %c0_16 = arith.constant 0 : index
    %44 = vector.load %arg8[%c0_15, %c0_16] : memref<3x128xbf16, #tpu.memory_space<vmem>>, vector<3x128xbf16>
    %45 = arith.truncf %43 : vector<128x8xf32> to vector<128x8xbf16>
    %cst_17 = arith.constant dense<0.000000e+00> : vector<3x8xf32>
    %46 = tpu.matmul %44, %45, %cst_17 {dimension_numbers = #tpu.dot_dimension_numbers<[1], [0], [0], [1], [0, 0, 1, 1], [], []>} : vector<3x128xbf16>, vector<128x8xbf16>, vector<3x8xf32> -> vector<3x8xf32>
    %c0_18 = arith.constant 0 : index
    %c0_19 = arith.constant 0 : index
    %47 = vector.load %arg9[%c0_18, %c0_19] : memref<3x1xf32, #tpu.memory_space<vmem>>, vector<3x1xf32>
    %48 = vector.broadcast %47 : vector<3x1xf32> to vector<3x8xf32>
    %49 = arith.addf %46, %48 : vector<3x8xf32>
    %50 = math.tanh %49 : vector<3x8xf32>
    %51 = arith.addf %50, %0 : vector<3x8xf32>
    %c0_20 = arith.constant 0 : index
    %c0_21 = arith.constant 0 : index
    %52 = vector.load %arg10[%c0_20, %c0_21] : memref<3x8xf32, #tpu.memory_space<vmem>>, vector<3x8xf32>
    tpu.vector_store %arg10[%c0_20, %c0_21], %51 {strides = array<i32>} : memref<3x8xf32, #tpu.memory_space<vmem>>, vector<3x8xf32>,
    return
  }
  func.func @transform_0(%arg0: i32) -> (i32, i32) {
    %c0_i32 = arith.constant 0 : i32
    %c0_i32_0 = arith.constant 0 : i32
    return %c0_i32, %arg0 : i32, i32
  }
  func.func @transform_1(%arg0: i32) -> (i32, i32) {
    %c0_i32 = arith.constant 0 : i32
    %c0_i32_0 = arith.constant 0 : i32
    return %c0_i32, %arg0 : i32, i32
  }
  func.func @transform_2(%arg0: i32) -> (i32, i32) {
    %c0_i32 = arith.constant 0 : i32
    %c0_i32_0 = arith.constant 0 : i32
    %c0_i32_1 = arith.constant 0 : i32
    return %c0_i32, %c0_i32_0 : i32, i32
  }
  func.func @transform_3(%arg0: i32) -> (i32, i32) {
    %c0_i32 = arith.constant 0 : i32
    %c0_i32_0 = arith.constant 0 : i32
    %c0_i32_1 = arith.constant 0 : i32
    return %c0_i32, %c0_i32_0 : i32, i32
  }
  func.func @transform_4(%arg0: i32) -> (i32, i32) {
    %c0_i32 = arith.constant 0 : i32
    %c0_i32_0 = arith.constant 0 : i32
    %c0_i32_1 = arith.constant 0 : i32
    return %c0_i32, %c0_i32_0 : i32, i32
  }
  func.func @transform_5(%arg0: i32) -> (i32, i32) {
    %c0_i32 = arith.constant 0 : i32
    %c0_i32_0 = arith.constant 0 : i32
    %c0_i32_1 = arith.constant 0 : i32
    return %c0_i32, %c0_i32_0 : i32, i32
  }
  func.func @transform_6(%arg0: i32) -> (i32, i32) {
    %c0_i32 = arith.constant 0 : i32
    %c0_i32_0 = arith.constant 0 : i32
    %c0_i32_1 = arith.constant 0 : i32
    return %c0_i32, %c0_i32_0 : i32, i32
  }
  func.func @transform_7(%arg0: i32) -> (i32, i32) {
    %c0_i32 = arith.constant 0 : i32
    %c0_i32_0 = arith.constant 0 : i32
    %c0_i32_1 = arith.constant 0 : i32
    return %c0_i32, %c0_i32_0 : i32, i32
  }
  func.func @transform_8(%arg0: i32) -> (i32, i32) {
    %c0_i32 = arith.constant 0 : i32
    %c0_i32_0 = arith.constant 0 : i32
    %c0_i32_1 = arith.constant 0 : i32
    return %c0_i32, %c0_i32_0 : i32, i32
  }
  func.func @transform_9(%arg0: i32) -> (i32, i32) {
    %c0_i32 = arith.constant 0 : i32
    %c0_i32_0 = arith.constant 0 : i32
    return %c0_i32, %arg0 : i32, i32
  }
}

</mosaic_0001>

<llo_original>
// kernel: dreamer_forward_t.1
$region0: #{dreamer_forward_t.1}
  #allocation0 [shape = 'u32[]', space=smem, size = 0x4, offset = 0x4, fixed_abs, tag = 'smem constant byte address 0x4 - core index']
  #allocation1 [shape = 'u32[72,128]{1,0:T(1,128)}', space=vmem, size = 0x9000, scoped, tag = 'internal scratch']
  %s0 = inlined_call_operand.vmem [shape: f32[3,8], index: 0, kind: input, shape index: {}]
  %s1 = inlined_call_operand.vmem [shape: f32[1,8], index: 1, kind: input, shape index: {}]
  %s2 = inlined_call_operand.vmem [shape: f32[128,3], index: 2, kind: input, shape index: {}]
  %s3 = inlined_call_operand.vmem [shape: f32[128,1], index: 3, kind: input, shape index: {}]
  %s4 = inlined_call_operand.vmem [shape: f32[128,1], index: 4, kind: input, shape index: {}]
  %s5 = inlined_call_operand.vmem [shape: bf16[128,128], index: 5, kind: input, shape index: {}]
  %s6 = inlined_call_operand.vmem [shape: f32[128,1], index: 6, kind: input, shape index: {}]
  %s7 = inlined_call_operand.vmem [shape: bf16[3,128], index: 7, kind: input, shape index: {}]
  %s8 = inlined_call_operand.vmem [shape: f32[3,1], index: 8, kind: input, shape index: {}]
  %s9 = inlined_call_operand.hbm [shape: f32[3,8], index: 9, kind: output, shape index: {}]
  %s10 = sld [smem:[#allocation0]]
  $region46: #{dreamer_forward_t.1} parent=0
    _
  %s12 = ssub.s32 1, %s10
  %s13 = scalar_select 0, %s12, %s10
  $region1: #{dreamer_forward_t.1} parent=0
    #allocation2 [shape = 'u8[2048]{0}', space=vmem, size = 0x800, scoped, tag = 'output window, operand 0, single buffered']
    #allocation3 [shape = 's32[1]{0}', space=sflag, size = 0x4, scoped, tag = 'scoped memory for dreamer_forward_t.1']
    %14 = vsyncpa [#allocation3], 0
    // Predicated region
    $region2: #{dreamer_forward_t.1} parent=1 // pred_check
      _
    $region3: #{dreamer_forward_t.1} parent=1 // pred_check_branch
      %16 = sbr.rel (0) target = $region5
    $region4: #{dreamer_forward_t.1} parent=1 // pred_region
      _
    $region5: #{dreamer_forward_t.1} parent=1 // pred_fallthru
      _
    // Predicated region
    $region6: #{dreamer_forward_t.1} parent=1 // pred_check
      _
    $region7: #{dreamer_forward_t.1} parent=1 // pred_check_branch
      %18 = sbr.rel (0) target = $region9
    $region8: #{dreamer_forward_t.1} parent=1 // pred_region
      _
    $region9: #{dreamer_forward_t.1} parent=1 // pred_fallthru
      _
    // Predicated region
    $region10: #{dreamer_forward_t.1} parent=1 // pred_check
      _
    $region11: #{dreamer_forward_t.1} parent=1 // pred_check_branch
      %20 = sbr.rel (0) target = $region13
    $region12: #{dreamer_forward_t.1} parent=1 // pred_region
      _
    $region13: #{dreamer_forward_t.1} parent=1 // pred_fallthru
      _
    // Predicated region
    $region14: #{dreamer_forward_t.1} parent=1 // pred_check
      _
    $region15: #{dreamer_forward_t.1} parent=1 // pred_check_branch
      %22 = sbr.rel (0) target = $region17
    $region16: #{dreamer_forward_t.1} parent=1 // pred_region
      _
    $region17: #{dreamer_forward_t.1} parent=1 // pred_fallthru
      _
    // Predicated region
    $region18: #{dreamer_forward_t.1} parent=1 // pred_check
      _
    $region19: #{dreamer_forward_t.1} parent=1 // pred_check_branch
      %24 = sbr.rel (0) target = $region21
    $region20: #{dreamer_forward_t.1} parent=1 // pred_region
      _
    $region21: #{dreamer_forward_t.1} parent=1 // pred_fallthru
      _
    // Predicated region
    $region22: #{dreamer_forward_t.1} parent=1 // pred_check
      _
    $region23: #{dreamer_forward_t.1} parent=1 // pred_check_branch
      %26 = sbr.rel (0) target = $region25
    $region24: #{dreamer_forward_t.1} parent=1 // pred_region
      _
    $region25: #{dreamer_forward_t.1} parent=1 // pred_fallthru
      _
    // Predicated region
    $region26: #{dreamer_forward_t.1} parent=1 // pred_check
      _
    $region27: #{dreamer_forward_t.1} parent=1 // pred_check_branch
      %28 = sbr.rel (0) target = $region29
    $region28: #{dreamer_forward_t.1} parent=1 // pred_region
      _
    $region29: #{dreamer_forward_t.1} parent=1 // pred_fallthru
      _
    // Predicated region
    $region30: #{dreamer_forward_t.1} parent=1 // pred_check
      _
    $region31: #{dreamer_forward_t.1} parent=1 // pred_check_branch
      %30 = sbr.rel (0) target = $region33
    $region32: #{dreamer_forward_t.1} parent=1 // pred_region
      _
    $region33: #{dreamer_forward_t.1} parent=1 // pred_fallthru
      _
    // Predicated region
    $region34: #{dreamer_forward_t.1} parent=1 // pred_check
      _
    $region35: #{dreamer_forward_t.1} parent=1 // pred_check_branch
      %32 = sbr.rel (0) target = $region37
    $region36: #{dreamer_forward_t.1} parent=1 // pred_region
      _
    $region37: #{dreamer_forward_t.1} parent=1 // pred_fallthru
      _
    %v33 = vld [vmem:[%s0] sm:$0x7]
    %v34 = vld [vmem:[%s1] sm:$0x1]
    %v35 = vld [vmem:[%s2] sm:$0xff]
    %v36 = vld [vmem:[%s2 + $0x8] sm:$0xff]
    %v37 = vld [vmem:[%s2 + $0x10] sm:$0xff]
    %v38 = vld [vmem:[%s2 + $0x18] sm:$0xff]
    %v39 = vld [vmem:[%s2 + $0x20] sm:$0xff]
    %v40 = vld [vmem:[%s2 + $0x28] sm:$0xff]
    %v41 = vld [vmem:[%s2 + $0x30] sm:$0xff]
    %v42 = vld [vmem:[%s2 + $0x38] sm:$0xff]
    %v43 = vld [vmem:[%s2 + $0x40] sm:$0xff]
    %v44 = vld [vmem:[%s2 + $0x48] sm:$0xff]
    %v45 = vld [vmem:[%s2 + $0x50] sm:$0xff]
    %v46 = vld [vmem:[%s2 + $0x58] sm:$0xff]
    %v47 = vld [vmem:[%s2 + $0x60] sm:$0xff]
    %v48 = vld [vmem:[%s2 + $0x68] sm:$0xff]
    %v49 = vld [vmem:[%s2 + $0x70] sm:$0xff]
    %v50 = vld [vmem:[%s2 + $0x78] sm:$0xff]
    %v51 = vld [vmem:[%s3] sm:$0xff]
    %v52 = vld [vmem:[%s3 + $0x8] sm:$0xff]
    %v53 = vld [vmem:[%s3 + $0x10] sm:$0xff]
    %v54 = vld [vmem:[%s3 + $0x18] sm:$0xff]
    %v55 = vld [vmem:[%s3 + $0x20] sm:$0xff]
    %v56 = vld [vmem:[%s3 + $0x28] sm:$0xff]
    %v57 = vld [vmem:[%s3 + $0x30] sm:$0xff]
    %v58 = vld [vmem:[%s3 + $0x38] sm:$0xff]
    %v59 = vld [vmem:[%s3 + $0x40] sm:$0xff]
    %v60 = vld [vmem:[%s3 + $0x48] sm:$0xff]
    %v61 = vld [vmem:[%s3 + $0x50] sm:$0xff]
    %v62 = vld [vmem:[%s3 + $0x58] sm:$0xff]
    %v63 = vld [vmem:[%s3 + $0x60] sm:$0xff]
    %v64 = vld [vmem:[%s3 + $0x68] sm:$0xff]
    %v65 = vld [vmem:[%s3 + $0x70] sm:$0xff]
    %v66 = vld [vmem:[%s3 + $0x78] sm:$0xff]
    %68 = vset.pattern.permute.xlu0 0
    %69 = vperm.xlu0 %68, %v35
    %v70 = vpop.permute.xlu0 %69
    %73 = vset.pattern.permute.xlu0 0
    %74 = vperm.xlu0 %73, %v36
    %v75 = vpop.permute.xlu0 %74
    %78 = vset.pattern.permute.xlu0 0
    %79 = vperm.xlu0 %78, %v37
    %v80 = vpop.permute.xlu0 %79
    %83 = vset.pattern.permute.xlu0 0
    %84 = vperm.xlu0 %83, %v38
    %v85 = vpop.permute.xlu0 %84
    %88 = vset.pattern.permute.xlu0 0
    %89 = vperm.xlu0 %88, %v39
    %v90 = vpop.permute.xlu0 %89
    %93 = vset.pattern.permute.xlu0 0
    %94 = vperm.xlu0 %93, %v40
    %v95 = vpop.permute.xlu0 %94
    %98 = vset.pattern.permute.xlu0 0
    %99 = vperm.xlu0 %98, %v41
    %v100 = vpop.permute.xlu0 %99
    %103 = vset.pattern.permute.xlu0 0
    %104 = vperm.xlu0 %103, %v42
    %v105 = vpop.permute.xlu0 %104
    %108 = vset.pattern.permute.xlu0 0
    %109 = vperm.xlu0 %108, %v43
    %v110 = vpop.permute.xlu0 %109
    %113 = vset.pattern.permute.xlu0 0
    %114 = vperm.xlu0 %113, %v44
    %v115 = vpop.permute.xlu0 %114
    %118 = vset.pattern.permute.xlu0 0
    %119 = vperm.xlu0 %118, %v45
    %v120 = vpop.permute.xlu0 %119
    %123 = vset.pattern.permute.xlu0 0
    %124 = vperm.xlu0 %123, %v46
    %v125 = vpop.permute.xlu0 %124
    %128 = vset.pattern.permute.xlu0 0
    %129 = vperm.xlu0 %128, %v47
    %v130 = vpop.permute.xlu0 %129
    %133 = vset.pattern.permute.xlu0 0
    %134 = vperm.xlu0 %133, %v48
    %v135 = vpop.permute.xlu0 %134
    %138 = vset.pattern.permute.xlu0 0
    %139 = vperm.xlu0 %138, %v49
    %v140 = vpop.permute.xlu0 %139
    %143 = vset.pattern.permute.xlu0 0
    %144 = vperm.xlu0 %143, %v50
    %v145 = vpop.permute.xlu0 %144
    %v147 = vperm.slane %v33, 0
    %v148 = vmul.f32 %v70, %v147
    %v149 = vmul.f32 %v75, %v147
    %v150 = vmul.f32 %v80, %v147
    %v151 = vmul.f32 %v85, %v147
    %v152 = vmul.f32 %v90, %v147
    %v153 = vmul.f32 %v95, %v147
    %v154 = vmul.f32 %v100, %v147
    %v155 = vmul.f32 %v105, %v147
    %v156 = vmul.f32 %v110, %v147
    %v157 = vmul.f32 %v115, %v147
    %v158 = vmul.f32 %v120, %v147
    %v159 = vmul.f32 %v125, %v147
    %v160 = vmul.f32 %v130, %v147
    %v161 = vmul.f32 %v135, %v147
    %v162 = vmul.f32 %v140, %v147
    %v163 = vmul.f32 %v145, %v147
    %164 = vset.pattern.permute.xlu0 1
    %165 = vperm.xlu0 %164, %v35
    %v166 = vpop.permute.xlu0 %165
    %168 = vset.pattern.permute.xlu0 1
    %169 = vperm.xlu0 %168, %v36
    %v170 = vpop.permute.xlu0 %169
    %172 = vset.pattern.permute.xlu0 1
    %173 = vperm.xlu0 %172, %v37
    %v174 = vpop.permute.xlu0 %173
    %176 = vset.pattern.permute.xlu0 1
    %177 = vperm.xlu0 %176, %v38
    %v178 = vpop.permute.xlu0 %177
    %180 = vset.pattern.permute.xlu0 1
    %181 = vperm.xlu0 %180, %v39
    %v182 = vpop.permute.xlu0 %181
    %184 = vset.pattern.permute.xlu0 1
    %185 = vperm.xlu0 %184, %v40
    %v186 = vpop.permute.xlu0 %185
    %188 = vset.pattern.permute.xlu0 1
    %189 = vperm.xlu0 %188, %v41
    %v190 = vpop.permute.xlu0 %189
    %192 = vset.pattern.permute.xlu0 1
    %193 = vperm.xlu0 %192, %v42
    %v194 = vpop.permute.xlu0 %193
    %196 = vset.pattern.permute.xlu0 1
    %197 = vperm.xlu0 %196, %v43
    %v198 = vpop.permute.xlu0 %197
    %200 = vset.pattern.permute.xlu0 1
    %201 = vperm.xlu0 %200, %v44
    %v202 = vpop.permute.xlu0 %201
    %204 = vset.pattern.permute.xlu0 1
    %205 = vperm.xlu0 %204, %v45
    %v206 = vpop.permute.xlu0 %205
    %208 = vset.pattern.permute.xlu0 1
    %209 = vperm.xlu0 %208, %v46
    %v210 = vpop.permute.xlu0 %209
    %212 = vset.pattern.permute.xlu0 1
    %213 = vperm.xlu0 %212, %v47
    %v214 = vpop.permute.xlu0 %213
    %216 = vset.pattern.permute.xlu0 1
    %217 = vperm.xlu0 %216, %v48
    %v218 = vpop.permute.xlu0 %217
    %220 = vset.pattern.permute.xlu0 1
    %221 = vperm.xlu0 %220, %v49
    %v222 = vpop.permute.xlu0 %221
    %224 = vset.pattern.permute.xlu0 1
    %225 = vperm.xlu0 %224, %v50
    %v226 = vpop.permute.xlu0 %225
    %v228 = vperm.slane %v33, 1
    %v229 = vmul.f32 %v166, %v228
    %v230 = vmul.f32 %v170, %v228
    %v231 = vmul.f32 %v174, %v228
    %v232 = vmul.f32 %v178, %v228
    %v233 = vmul.f32 %v182, %v228
    %v234 = vmul.f32 %v186, %v228
    %v235 = vmul.f32 %v190, %v228
    %v236 = vmul.f32 %v194, %v228
    %v237 = vmul.f32 %v198, %v228
    %v238 = vmul.f32 %v202, %v228
    %v239 = vmul.f32 %v206, %v228
    %v240 = vmul.f32 %v210, %v228
    %v241 = vmul.f32 %v214, %v228
    %v242 = vmul.f32 %v218, %v228
    %v243 = vmul.f32 %v222, %v228
    %v244 = vmul.f32 %v226, %v228
    %v245 = vadd.f32 %v148, %v229
    %v246 = vadd.f32 %v149, %v230
    %v247 = vadd.f32 %v150, %v231
    %v248 = vadd.f32 %v151, %v232
    %v249 = vadd.f32 %v152, %v233
    %v250 = vadd.f32 %v153, %v234
    %v251 = vadd.f32 %v154, %v235
    %v252 = vadd.f32 %v155, %v236
    %v253 = vadd.f32 %v156, %v237
    %v254 = vadd.f32 %v157, %v238
    %v255 = vadd.f32 %v158, %v239
    %v256 = vadd.f32 %v159, %v240
    %v257 = vadd.f32 %v160, %v241
    %v258 = vadd.f32 %v161, %v242
    %v259 = vadd.f32 %v162, %v243
    %v260 = vadd.f32 %v163, %v244
    %261 = vset.pattern.permute.xlu0 2
    %262 = vperm.xlu0 %261, %v35
    %v263 = vpop.permute.xlu0 %262
    %265 = vset.pattern.permute.xlu0 2
    %266 = vperm.xlu0 %265, %v36
    %v267 = vpop.permute.xlu0 %266
    %269 = vset.pattern.permute.xlu0 2
    %270 = vperm.xlu0 %269, %v37
    %v271 = vpop.permute.xlu0 %270
    %273 = vset.pattern.permute.xlu0 2
    %274 = vperm.xlu0 %273, %v38
    %v275 = vpop.permute.xlu0 %274
    %277 = vset.pattern.permute.xlu0 2
    %278 = vperm.xlu0 %277, %v39
    %v279 = vpop.permute.xlu0 %278
    %281 = vset.pattern.permute.xlu0 2
    %282 = vperm.xlu0 %281, %v40
    %v283 = vpop.permute.xlu0 %282
    %285 = vset.pattern.permute.xlu0 2
    %286 = vperm.xlu0 %285, %v41
    %v287 = vpop.permute.xlu0 %286
    %289 = vset.pattern.permute.xlu0 2
    %290 = vperm.xlu0 %289, %v42
    %v291 = vpop.permute.xlu0 %290
    %293 = vset.pattern.permute.xlu0 2
    %294 = vperm.xlu0 %293, %v43
    %v295 = vpop.permute.xlu0 %294
    %297 = vset.pattern.permute.xlu0 2
    %298 = vperm.xlu0 %297, %v44
    %v299 = vpop.permute.xlu0 %298
    %301 = vset.pattern.permute.xlu0 2
    %302 = vperm.xlu0 %301, %v45
    %v303 = vpop.permute.xlu0 %302
    %305 = vset.pattern.permute.xlu0 2
    %306 = vperm.xlu0 %305, %v46
    %v307 = vpop.permute.xlu0 %306
    %309 = vset.pattern.permute.xlu0 2
    %310 = vperm.xlu0 %309, %v47
    %v311 = vpop.permute.xlu0 %310
    %313 = vset.pattern.permute.xlu0 2
    %314 = vperm.xlu0 %313, %v48
    %v315 = vpop.permute.xlu0 %314
    %317 = vset.pattern.permute.xlu0 2
    %318 = vperm.xlu0 %317, %v49
    %v319 = vpop.permute.xlu0 %318
    %321 = vset.pattern.permute.xlu0 2
    %322 = vperm.xlu0 %321, %v50
    %v323 = vpop.permute.xlu0 %322
    %v325 = vperm.slane %v33, 2
    %v326 = vmul.f32 %v263, %v325
    %v327 = vmul.f32 %v267, %v325
    %v328 = vmul.f32 %v271, %v325
    %v329 = vmul.f32 %v275, %v325
    %v330 = vmul.f32 %v279, %v325
    %v331 = vmul.f32 %v283, %v325
    %v332 = vmul.f32 %v287, %v325
    %v333 = vmul.f32 %v291, %v325
    %v334 = vmul.f32 %v295, %v325
    %v335 = vmul.f32 %v299, %v325
    %v336 = vmul.f32 %v303, %v325
    %v337 = vmul.f32 %v307, %v325
    %v338 = vmul.f32 %v311, %v325
    %v339 = vmul.f32 %v315, %v325
    %v340 = vmul.f32 %v319, %v325
    %v341 = vmul.f32 %v323, %v325
    %v342 = vadd.f32 %v245, %v326
    %v343 = vadd.f32 %v246, %v327
    %v344 = vadd.f32 %v247, %v328
    %v345 = vadd.f32 %v248, %v329
    %v346 = vadd.f32 %v249, %v330
    %v347 = vadd.f32 %v250, %v331
    %v348 = vadd.f32 %v251, %v332
    %v349 = vadd.f32 %v252, %v333
    %v350 = vadd.f32 %v253, %v334
    %v351 = vadd.f32 %v254, %v335
    %v352 = vadd.f32 %v255, %v336
    %v353 = vadd.f32 %v256, %v337
    %v354 = vadd.f32 %v257, %v338
    %v355 = vadd.f32 %v258, %v339
    %v356 = vadd.f32 %v259, %v340
    %v357 = vadd.f32 %v260, %v341
    %359 = vset.pattern.permute.xlu0 0
    %360 = vperm.xlu0 %359, %v51
    %v361 = vpop.permute.xlu0 %360
    %364 = vset.pattern.permute.xlu0 0
    %365 = vperm.xlu0 %364, %v52
    %v366 = vpop.permute.xlu0 %365
    %369 = vset.pattern.permute.xlu0 0
    %370 = vperm.xlu0 %369, %v53
    %v371 = vpop.permute.xlu0 %370
    %374 = vset.pattern.permute.xlu0 0
    %375 = vperm.xlu0 %374, %v54
    %v376 = vpop.permute.xlu0 %375
    %379 = vset.pattern.permute.xlu0 0
    %380 = vperm.xlu0 %379, %v55
    %v381 = vpop.permute.xlu0 %380
    %384 = vset.pattern.permute.xlu0 0
    %385 = vperm.xlu0 %384, %v56
    %v386 = vpop.permute.xlu0 %385
    %389 = vset.pattern.permute.xlu0 0
    %390 = vperm.xlu0 %389, %v57
    %v391 = vpop.permute.xlu0 %390
    %394 = vset.pattern.permute.xlu0 0
    %395 = vperm.xlu0 %394, %v58
    %v396 = vpop.permute.xlu0 %395
    %399 = vset.pattern.permute.xlu0 0
    %400 = vperm.xlu0 %399, %v59
    %v401 = vpop.permute.xlu0 %400
    %404 = vset.pattern.permute.xlu0 0
    %405 = vperm.xlu0 %404, %v60
    %v406 = vpop.permute.xlu0 %405
    %409 = vset.pattern.permute.xlu0 0
    %410 = vperm.xlu0 %409, %v61
    %v411 = vpop.permute.xlu0 %410
    %414 = vset.pattern.permute.xlu0 0
    %415 = vperm.xlu0 %414, %v62
    %v416 = vpop.permute.xlu0 %415
    %419 = vset.pattern.permute.xlu0 0
    %420 = vperm.xlu0 %419, %v63
    %v421 = vpop.permute.xlu0 %420
    %424 = vset.pattern.permute.xlu0 0
    %425 = vperm.xlu0 %424, %v64
    %v426 = vpop.permute.xlu0 %425
    %429 = vset.pattern.permute.xlu0 0
    %430 = vperm.xlu0 %429, %v65
    %v431 = vpop.permute.xlu0 %430
    %434 = vset.pattern.permute.xlu0 0
    %435 = vperm.xlu0 %434, %v66
    %v436 = vpop.permute.xlu0 %435
    %v439 = vperm.slane %v34, 0
    %v441 = vmul.f32 %v361, %v439
    %v442 = vmul.f32 %v366, %v439
    %v443 = vmul.f32 %v371, %v439
    %v444 = vmul.f32 %v376, %v439
    %v445 = vmul.f32 %v381, %v439
    %v446 = vmul.f32 %v386, %v439
    %v447 = vmul.f32 %v391, %v439
    %v448 = vmul.f32 %v396, %v439
    %v449 = vmul.f32 %v401, %v439
    %v450 = vmul.f32 %v406, %v439
    %v451 = vmul.f32 %v411, %v439
    %v452 = vmul.f32 %v416, %v439
    %v453 = vmul.f32 %v421, %v439
    %v454 = vmul.f32 %v426, %v439
    %v455 = vmul.f32 %v431, %v439
    %v456 = vmul.f32 %v436, %v439
    %v457 = vadd.f32 %v342, %v441
    %v458 = vadd.f32 %v343, %v442
    %v459 = vadd.f32 %v344, %v443
    %v460 = vadd.f32 %v345, %v444
    %v461 = vadd.f32 %v346, %v445
    %v462 = vadd.f32 %v347, %v446
    %v463 = vadd.f32 %v348, %v447
    %v464 = vadd.f32 %v349, %v448
    %v465 = vadd.f32 %v350, %v449
    %v466 = vadd.f32 %v351, %v450
    %v467 = vadd.f32 %v352, %v451
    %v468 = vadd.f32 %v353, %v452
    %v469 = vadd.f32 %v354, %v453
    %v470 = vadd.f32 %v355, %v454
    %v471 = vadd.f32 %v356, %v455
    %v472 = vadd.f32 %v357, %v456
    %v473 = vld [vmem:[%s4] sm:$0xff]
    %v474 = vld [vmem:[%s4 + $0x8] sm:$0xff]
    %v475 = vld [vmem:[%s4 + $0x10] sm:$0xff]
    %v476 = vld [vmem:[%s4 + $0x18] sm:$0xff]
    %v477 = vld [vmem:[%s4 + $0x20] sm:$0xff]
    %v478 = vld [vmem:[%s4 + $0x28] sm:$0xff]
    %v479 = vld [vmem:[%s4 + $0x30] sm:$0xff]
    %v480 = vld [vmem:[%s4 + $0x38] sm:$0xff]
    %v481 = vld [vmem:[%s4 + $0x40] sm:$0xff]
    %v482 = vld [vmem:[%s4 + $0x48] sm:$0xff]
    %v483 = vld [vmem:[%s4 + $0x50] sm:$0xff]
    %v484 = vld [vmem:[%s4 + $0x58] sm:$0xff]
    %v485 = vld [vmem:[%s4 + $0x60] sm:$0xff]
    %v486 = vld [vmem:[%s4 + $0x68] sm:$0xff]
    %v487 = vld [vmem:[%s4 + $0x70] sm:$0xff]
    %v488 = vld [vmem:[%s4 + $0x78] sm:$0xff]
    %490 = vset.pattern.permute.xlu0 0
    %491 = vperm.xlu0 %490, %v473
    %v492 = vpop.permute.xlu0 %491
    %495 = vset.pattern.permute.xlu0 0
    %496 = vperm.xlu0 %495, %v474
    %v497 = vpop.permute.xlu0 %496
    %500 = vset.pattern.permute.xlu0 0
    %501 = vperm.xlu0 %500, %v475
    %v502 = vpop.permute.xlu0 %501
    %505 = vset.pattern.permute.xlu0 0
    %506 = vperm.xlu0 %505, %v476
    %v507 = vpop.permute.xlu0 %506
    %510 = vset.pattern.permute.xlu0 0
    %511 = vperm.xlu0 %510, %v477
    %v512 = vpop.permute.xlu0 %511
    %515 = vset.pattern.permute.xlu0 0
    %516 = vperm.xlu0 %515, %v478
    %v517 = vpop.permute.xlu0 %516
    %520 = vset.pattern.permute.xlu0 0
    %521 = vperm.xlu0 %520, %v479
    %v522 = vpop.permute.xlu0 %521
    %525 = vset.pattern.permute.xlu0 0
    %526 = vperm.xlu0 %525, %v480
    %v527 = vpop.permute.xlu0 %526
    %530 = vset.pattern.permute.xlu0 0
    %531 = vperm.xlu0 %530, %v481
    %v532 = vpop.permute.xlu0 %531
    %535 = vset.pattern.permute.xlu0 0
    %536 = vperm.xlu0 %535, %v482
    %v537 = vpop.permute.xlu0 %536
    %540 = vset.pattern.permute.xlu0 0
    %541 = vperm.xlu0 %540, %v483
    %v542 = vpop.permute.xlu0 %541
    %545 = vset.pattern.permute.xlu0 0
    %546 = vperm.xlu0 %545, %v484
    %v547 = vpop.permute.xlu0 %546
    %550 = vset.pattern.permute.xlu0 0
    %551 = vperm.xlu0 %550, %v485
    %v552 = vpop.permute.xlu0 %551
    %555 = vset.pattern.permute.xlu0 0
    %556 = vperm.xlu0 %555, %v486
    %v557 = vpop.permute.xlu0 %556
    %560 = vset.pattern.permute.xlu0 0
    %561 = vperm.xlu0 %560, %v487
    %v562 = vpop.permute.xlu0 %561
    %565 = vset.pattern.permute.xlu0 0
    %566 = vperm.xlu0 %565, %v488
    %v567 = vpop.permute.xlu0 %566
    %v569 = vadd.f32 %v457, %v492
    %v570 = vadd.f32 %v458, %v497
    %v571 = vadd.f32 %v459, %v502
    %v572 = vadd.f32 %v460, %v507
    %v573 = vadd.f32 %v461, %v512
    %v574 = vadd.f32 %v462, %v517
    %v575 = vadd.f32 %v463, %v522
    %v576 = vadd.f32 %v464, %v527
    %v577 = vadd.f32 %v465, %v532
    %v578 = vadd.f32 %v466, %v537
    %v579 = vadd.f32 %v467, %v542
    %v580 = vadd.f32 %v468, %v547
    %v581 = vadd.f32 %v469, %v552
    %v582 = vadd.f32 %v470, %v557
    %v583 = vadd.f32 %v471, %v562
    %v584 = vadd.f32 %v472, %v567
    %v585 = vxor.u32 %v569, 2147483648
    %v586 = vxor.u32 %v570, 2147483648
    %v587 = vxor.u32 %v571, 2147483648
    %v588 = vxor.u32 %v572, 2147483648
    %v589 = vxor.u32 %v573, 2147483648
    %v590 = vxor.u32 %v574, 2147483648
    %v591 = vxor.u32 %v575, 2147483648
    %v592 = vxor.u32 %v576, 2147483648
    %v593 = vxor.u32 %v577, 2147483648
    %v594 = vxor.u32 %v578, 2147483648
    %v595 = vxor.u32 %v579, 2147483648
    %v596 = vxor.u32 %v580, 2147483648
    %v597 = vxor.u32 %v581, 2147483648
    %v598 = vxor.u32 %v582, 2147483648
    %v599 = vxor.u32 %v583, 2147483648
    %v600 = vxor.u32 %v584, 2147483648
    %v601 = vmul.f32 %v585, 1.442695
    %v602 = vpow.pop %v601
    %v603 = vmul.f32 %v586, 1.442695
    %v604 = vpow.pop %v603
    %v605 = vmul.f32 %v587, 1.442695
    %v606 = vpow.pop %v605
    %v607 = vmul.f32 %v588, 1.442695
    %v608 = vpow.pop %v607
    %v609 = vmul.f32 %v589, 1.442695
    %v610 = vpow.pop %v609
    %v611 = vmul.f32 %v590, 1.442695
    %v612 = vpow.pop %v611
    %v613 = vmul.f32 %v591, 1.442695
    %v614 = vpow.pop %v613
    %v615 = vmul.f32 %v592, 1.442695
    %v616 = vpow.pop %v615
    %v617 = vmul.f32 %v593, 1.442695
    %v618 = vpow.pop %v617
    %v619 = vmul.f32 %v594, 1.442695
    %v620 = vpow.pop %v619
    %v621 = vmul.f32 %v595, 1.442695
    %v622 = vpow.pop %v621
    %v623 = vmul.f32 %v596, 1.442695
    %v624 = vpow.pop %v623
    %v625 = vmul.f32 %v597, 1.442695
    %v626 = vpow.pop %v625
    %v627 = vmul.f32 %v598, 1.442695
    %v628 = vpow.pop %v627
    %v629 = vmul.f32 %v599, 1.442695
    %v630 = vpow.pop %v629
    %v631 = vmul.f32 %v600, 1.442695
    %v632 = vpow.pop %v631
    %v633 = vadd.f32 %v602, 1.0
    %v634 = vadd.f32 %v604, 1.0
    %v635 = vadd.f32 %v606, 1.0
    %v636 = vadd.f32 %v608, 1.0
    %v637 = vadd.f32 %v610, 1.0
    %v638 = vadd.f32 %v612, 1.0
    %v639 = vadd.f32 %v614, 1.0
    %v640 = vadd.f32 %v616, 1.0
    %v641 = vadd.f32 %v618, 1.0
    %v642 = vadd.f32 %v620, 1.0
    %v643 = vadd.f32 %v622, 1.0
    %v644 = vadd.f32 %v624, 1.0
    %v645 = vadd.f32 %v626, 1.0
    %v646 = vadd.f32 %v628, 1.0
    %v647 = vadd.f32 %v630, 1.0
    %v648 = vadd.f32 %v632, 1.0
    %v649 = vrcp.pop %v633
    %v650 = vmul.f32 %v633, %v649
    %v651 = vsub.f32 1.0, %v650
    %v652 = vmul.f32 %v649, %v651
    %v653 = vadd.f32 %v649, %v652
    %vm654 = vweird.f32 %v633
    %vm655 = vweird.f32 %v649
    %vm656 = vmor %vm654, %vm655
    %v657 = vsel %vm656, %v649, %v653
    %v658 = vand.u32 2147483647, %v633
    %vm659 = vcmp.eq.f32.partialorder %v658, 8.507059e+37
    %v660 = vand.u32 %v633, 2147483648
    %v661 = vor.u32 1.1754944e-38, %v660
    %v662 = vsel %vm659, %v661, %v657
    %v663 = vmul.f32 1.0, %v662
    %v664 = vrcp.pop %v634
    %v665 = vmul.f32 %v634, %v664
    %v666 = vsub.f32 1.0, %v665
    %v667 = vmul.f32 %v664, %v666
    %v668 = vadd.f32 %v664, %v667
    %vm669 = vweird.f32 %v634
    %vm670 = vweird.f32 %v664
    %vm671 = vmor %vm669, %vm670
    %v672 = vsel %vm671, %v664, %v668
    %v673 = vand.u32 2147483647, %v634
    %vm674 = vcmp.eq.f32.partialorder %v673, 8.507059e+37
    %v675 = vand.u32 %v634, 2147483648
    %v676 = vor.u32 1.1754944e-38, %v675
    %v677 = vsel %vm674, %v676, %v672
    %v678 = vmul.f32 1.0, %v677
    %v679 = vrcp.pop %v635
    %v680 = vmul.f32 %v635, %v679
    %v681 = vsub.f32 1.0, %v680
    %v682 = vmul.f32 %v679, %v681
    %v683 = vadd.f32 %v679, %v682
    %vm684 = vweird.f32 %v635
    %vm685 = vweird.f32 %v679
    %vm686 = vmor %vm684, %vm685
    %v687 = vsel %vm686, %v679, %v683
    %v688 = vand.u32 2147483647, %v635
    %vm689 = vcmp.eq.f32.partialorder %v688, 8.507059e+37
    %v690 = vand.u32 %v635, 2147483648
    %v691 = vor.u32 1.1754944e-38, %v690
    %v692 = vsel %vm689, %v691, %v687
    %v693 = vmul.f32 1.0, %v692
    %v694 = vrcp.pop %v636
    %v695 = vmul.f32 %v636, %v694
    %v696 = vsub.f32 1.0, %v695
    %v697 = vmul.f32 %v694, %v696
    %v698 = vadd.f32 %v694, %v697
    %vm699 = vweird.f32 %v636
    %vm700 = vweird.f32 %v694
    %vm701 = vmor %vm699, %vm700
    %v702 = vsel %vm701, %v694, %v698
    %v703 = vand.u32 2147483647, %v636
    %vm704 = vcmp.eq.f32.partialorder %v703, 8.507059e+37
    %v705 = vand.u32 %v636, 2147483648
    %v706 = vor.u32 1.1754944e-38, %v705
    %v707 = vsel %vm704, %v706, %v702
    %v708 = vmul.f32 1.0, %v707
    %v709 = vrcp.pop %v637
    %v710 = vmul.f32 %v637, %v709
    %v711 = vsub.f32 1.0, %v710
    %v712 = vmul.f32 %v709, %v711
    %v713 = vadd.f32 %v709, %v712
    %vm714 = vweird.f32 %v637
    %vm715 = vweird.f32 %v709
    %vm716 = vmor %vm714, %vm715
    %v717 = vsel %vm716, %v709, %v713
    %v718 = vand.u32 2147483647, %v637
    %vm719 = vcmp.eq.f32.partialorder %v718, 8.507059e+37
    %v720 = vand.u32 %v637, 2147483648
    %v721 = vor.u32 1.1754944e-38, %v720
    %v722 = vsel %vm719, %v721, %v717
    %v723 = vmul.f32 1.0, %v722
    %v724 = vrcp.pop %v638
    %v725 = vmul.f32 %v638, %v724
    %v726 = vsub.f32 1.0, %v725
    %v727 = vmul.f32 %v724, %v726
    %v728 = vadd.f32 %v724, %v727
    %vm729 = vweird.f32 %v638
    %vm730 = vweird.f32 %v724
    %vm731 = vmor %vm729, %vm730
    %v732 = vsel %vm731, %v724, %v728
    %v733 = vand.u32 2147483647, %v638
    %vm734 = vcmp.eq.f32.partialorder %v733, 8.507059e+37
    %v735 = vand.u32 %v638, 2147483648
    %v736 = vor.u32 1.1754944e-38, %v735
    %v737 = vsel %vm734, %v736, %v732
    %v738 = vmul.f32 1.0, %v737
    %v739 = vrcp.pop %v639
    %v740 = vmul.f32 %v639, %v739
    %v741 = vsub.f32 1.0, %v740
    %v742 = vmul.f32 %v739, %v741
    %v743 = vadd.f32 %v739, %v742
    %vm744 = vweird.f32 %v639
    %vm745 = vweird.f32 %v739
    %vm746 = vmor %vm744, %vm745
    %v747 = vsel %vm746, %v739, %v743
    %v748 = vand.u32 2147483647, %v639
    %vm749 = vcmp.eq.f32.partialorder %v748, 8.507059e+37
    %v750 = vand.u32 %v639, 2147483648
    %v751 = vor.u32 1.1754944e-38, %v750
    %v752 = vsel %vm749, %v751, %v747
    %v753 = vmul.f32 1.0, %v752
    %v754 = vrcp.pop %v640
    %v755 = vmul.f32 %v640, %v754
    %v756 = vsub.f32 1.0, %v755
    %v757 = vmul.f32 %v754, %v756
    %v758 = vadd.f32 %v754, %v757
    %vm759 = vweird.f32 %v640
    %vm760 = vweird.f32 %v754
    %vm761 = vmor %vm759, %vm760
    %v762 = vsel %vm761, %v754, %v758
    %v763 = vand.u32 2147483647, %v640
    %vm764 = vcmp.eq.f32.partialorder %v763, 8.507059e+37
    %v765 = vand.u32 %v640, 2147483648
    %v766 = vor.u32 1.1754944e-38, %v765
    %v767 = vsel %vm764, %v766, %v762
    %v768 = vmul.f32 1.0, %v767
    %v769 = vrcp.pop %v641
    %v770 = vmul.f32 %v641, %v769
    %v771 = vsub.f32 1.0, %v770
    %v772 = vmul.f32 %v769, %v771
    %v773 = vadd.f32 %v769, %v772
    %vm774 = vweird.f32 %v641
    %vm775 = vweird.f32 %v769
    %vm776 = vmor %vm774, %vm775
    %v777 = vsel %vm776, %v769, %v773
    %v778 = vand.u32 2147483647, %v641
    %vm779 = vcmp.eq.f32.partialorder %v778, 8.507059e+37
    %v780 = vand.u32 %v641, 2147483648
    %v781 = vor.u32 1.1754944e-38, %v780
    %v782 = vsel %vm779, %v781, %v777
    %v783 = vmul.f32 1.0, %v782
    %v784 = vrcp.pop %v642
    %v785 = vmul.f32 %v642, %v784
    %v786 = vsub.f32 1.0, %v785
    %v787 = vmul.f32 %v784, %v786
    %v788 = vadd.f32 %v784, %v787
    %vm789 = vweird.f32 %v642
    %vm790 = vweird.f32 %v784
    %vm791 = vmor %vm789, %vm790
    %v792 = vsel %vm791, %v784, %v788
    %v793 = vand.u32 2147483647, %v642
    %vm794 = vcmp.eq.f32.partialorder %v793, 8.507059e+37
    %v795 = vand.u32 %v642, 2147483648
    %v796 = vor.u32 1.1754944e-38, %v795
    %v797 = vsel %vm794, %v796, %v792
    %v798 = vmul.f32 1.0, %v797
    %v799 = vrcp.pop %v643
    %v800 = vmul.f32 %v643, %v799
    %v801 = vsub.f32 1.0, %v800
    %v802 = vmul.f32 %v799, %v801
    %v803 = vadd.f32 %v799, %v802
    %vm804 = vweird.f32 %v643
    %vm805 = vweird.f32 %v799
    %vm806 = vmor %vm804, %vm805
    %v807 = vsel %vm806, %v799, %v803
    %v808 = vand.u32 2147483647, %v643
    %vm809 = vcmp.eq.f32.partialorder %v808, 8.507059e+37
    %v810 = vand.u32 %v643, 2147483648
    %v811 = vor.u32 1.1754944e-38, %v810
    %v812 = vsel %vm809, %v811, %v807
    %v813 = vmul.f32 1.0, %v812
    %v814 = vrcp.pop %v644
    %v815 = vmul.f32 %v644, %v814
    %v816 = vsub.f32 1.0, %v815
    %v817 = vmul.f32 %v814, %v816
    %v818 = vadd.f32 %v814, %v817
    %vm819 = vweird.f32 %v644
    %vm820 = vweird.f32 %v814
    %vm821 = vmor %vm819, %vm820
    %v822 = vsel %vm821, %v814, %v818
    %v823 = vand.u32 2147483647, %v644
    %vm824 = vcmp.eq.f32.partialorder %v823, 8.507059e+37
    %v825 = vand.u32 %v644, 2147483648
    %v826 = vor.u32 1.1754944e-38, %v825
    %v827 = vsel %vm824, %v826, %v822
    %v828 = vmul.f32 1.0, %v827
    %v829 = vrcp.pop %v645
    %v830 = vmul.f32 %v645, %v829
    %v831 = vsub.f32 1.0, %v830
    %v832 = vmul.f32 %v829, %v831
    %v833 = vadd.f32 %v829, %v832
    %vm834 = vweird.f32 %v645
    %vm835 = vweird.f32 %v829
    %vm836 = vmor %vm834, %vm835
    %v837 = vsel %vm836, %v829, %v833
    %v838 = vand.u32 2147483647, %v645
    %vm839 = vcmp.eq.f32.partialorder %v838, 8.507059e+37
    %v840 = vand.u32 %v645, 2147483648
    %v841 = vor.u32 1.1754944e-38, %v840
    %v842 = vsel %vm839, %v841, %v837
    %v843 = vmul.f32 1.0, %v842
    %v844 = vrcp.pop %v646
    %v845 = vmul.f32 %v646, %v844
    %v846 = vsub.f32 1.0, %v845
    %v847 = vmul.f32 %v844, %v846
    %v848 = vadd.f32 %v844, %v847
    %vm849 = vweird.f32 %v646
    %vm850 = vweird.f32 %v844
    %vm851 = vmor %vm849, %vm850
    %v852 = vsel %vm851, %v844, %v848
    %v853 = vand.u32 2147483647, %v646
    %vm854 = vcmp.eq.f32.partialorder %v853, 8.507059e+37
    %v855 = vand.u32 %v646, 2147483648
    %v856 = vor.u32 1.1754944e-38, %v855
    %v857 = vsel %vm854, %v856, %v852
    %v858 = vmul.f32 1.0, %v857
    %v859 = vrcp.pop %v647
    %v860 = vmul.f32 %v647, %v859
    %v861 = vsub.f32 1.0, %v860
    %v862 = vmul.f32 %v859, %v861
    %v863 = vadd.f32 %v859, %v862
    %vm864 = vweird.f32 %v647
    %vm865 = vweird.f32 %v859
    %vm866 = vmor %vm864, %vm865
    %v867 = vsel %vm866, %v859, %v863
    %v868 = vand.u32 2147483647, %v647
    %vm869 = vcmp.eq.f32.partialorder %v868, 8.507059e+37
    %v870 = vand.u32 %v647, 2147483648
    %v871 = vor.u32 1.1754944e-38, %v870
    %v872 = vsel %vm869, %v871, %v867
    %v873 = vmul.f32 1.0, %v872
    %v874 = vrcp.pop %v648
    %v875 = vmul.f32 %v648, %v874
    %v876 = vsub.f32 1.0, %v875
    %v877 = vmul.f32 %v874, %v876
    %v878 = vadd.f32 %v874, %v877
    %vm879 = vweird.f32 %v648
    %vm880 = vweird.f32 %v874
    %vm881 = vmor %vm879, %vm880
    %v882 = vsel %vm881, %v874, %v878
    %v883 = vand.u32 2147483647, %v648
    %vm884 = vcmp.eq.f32.partialorder %v883, 8.507059e+37
    %v885 = vand.u32 %v648, 2147483648
    %v886 = vor.u32 1.1754944e-38, %v885
    %v887 = vsel %vm884, %v886, %v882
    %v888 = vmul.f32 1.0, %v887
    %v889 = vld [vmem:[%s5] sm:$0xf]
    %v890 = vld [vmem:[%s5 + $0x4] sm:$0xf]
    %v891 = vld [vmem:[%s5 + $0x8] sm:$0xf]
    %v892 = vld [vmem:[%s5 + $0xc] sm:$0xf]
    %v893 = vld [vmem:[%s5 + $0x10] sm:$0xf]
    %v894 = vld [vmem:[%s5 + $0x14] sm:$0xf]
    %v895 = vld [vmem:[%s5 + $0x18] sm:$0xf]
    %v896 = vld [vmem:[%s5 + $0x1c] sm:$0xf]
    %v897 = vld [vmem:[%s5 + $0x20] sm:$0xf]
    %v898 = vld [vmem:[%s5 + $0x24] sm:$0xf]
    %v899 = vld [vmem:[%s5 + $0x28] sm:$0xf]
    %v900 = vld [vmem:[%s5 + $0x2c] sm:$0xf]
    %v901 = vld [vmem:[%s5 + $0x30] sm:$0xf]
    %v902 = vld [vmem:[%s5 + $0x34] sm:$0xf]
    %v903 = vld [vmem:[%s5 + $0x38] sm:$0xf]
    %v904 = vld [vmem:[%s5 + $0x3c] sm:$0xf]
    %v905 = vpack.c.bf16 %v678, %v663
    %v906 = vpack.c.bf16 %v708, %v693
    %v907 = vpack.c.bf16 %v738, %v723
    %v908 = vpack.c.bf16 %v768, %v753
    %v909 = vpack.c.bf16 %v798, %v783
    %v910 = vpack.c.bf16 %v828, %v813
    %v911 = vpack.c.bf16 %v858, %v843
    %v912 = vpack.c.bf16 %v888, %v873
    %v913 = vld [vmem:[%s6] sm:$0xff]
    %v914 = vld [vmem:[%s6 + $0x8] sm:$0xff]
    %v915 = vld [vmem:[%s6 + $0x10] sm:$0xff]
    %v916 = vld [vmem:[%s6 + $0x18] sm:$0xff]
    %v917 = vld [vmem:[%s6 + $0x20] sm:$0xff]
    %v918 = vld [vmem:[%s6 + $0x28] sm:$0xff]
    %v919 = vld [vmem:[%s6 + $0x30] sm:$0xff]
    %v920 = vld [vmem:[%s6 + $0x38] sm:$0xff]
    %v921 = vld [vmem:[%s6 + $0x40] sm:$0xff]
    %v922 = vld [vmem:[%s6 + $0x48] sm:$0xff]
    %v923 = vld [vmem:[%s6 + $0x50] sm:$0xff]
    %v924 = vld [vmem:[%s6 + $0x58] sm:$0xff]
    %v925 = vld [vmem:[%s6 + $0x60] sm:$0xff]
    %v926 = vld [vmem:[%s6 + $0x68] sm:$0xff]
    %v927 = vld [vmem:[%s6 + $0x70] sm:$0xff]
    %v928 = vld [vmem:[%s6 + $0x78] sm:$0xff]
    %930 = vset.pattern.permute.xlu0 0
    %931 = vperm.xlu0 %930, %v913
    %v932 = vpop.permute.xlu0 %931
    %935 = vset.pattern.permute.xlu0 0
    %936 = vperm.xlu0 %935, %v914
    %v937 = vpop.permute.xlu0 %936
    %940 = vset.pattern.permute.xlu0 0
    %941 = vperm.xlu0 %940, %v915
    %v942 = vpop.permute.xlu0 %941
    %945 = vset.pattern.permute.xlu0 0
    %946 = vperm.xlu0 %945, %v916
    %v947 = vpop.permute.xlu0 %946
    %950 = vset.pattern.permute.xlu0 0
    %951 = vperm.xlu0 %950, %v917
    %v952 = vpop.permute.xlu0 %951
    %955 = vset.pattern.permute.xlu0 0
    %956 = vperm.xlu0 %955, %v918
    %v957 = vpop.permute.xlu0 %956
    %960 = vset.pattern.permute.xlu0 0
    %961 = vperm.xlu0 %960, %v919
    %v962 = vpop.permute.xlu0 %961
    %965 = vset.pattern.permute.xlu0 0
    %966 = vperm.xlu0 %965, %v920
    %v967 = vpop.permute.xlu0 %966
    %970 = vset.pattern.permute.xlu0 0
    %971 = vperm.xlu0 %970, %v921
    %v972 = vpop.permute.xlu0 %971
    %975 = vset.pattern.permute.xlu0 0
    %976 = vperm.xlu0 %975, %v922
    %v977 = vpop.permute.xlu0 %976
    %980 = vset.pattern.permute.xlu0 0
    %981 = vperm.xlu0 %980, %v923
    %v982 = vpop.permute.xlu0 %981
    %985 = vset.pattern.permute.xlu0 0
    %986 = vperm.xlu0 %985, %v924
    %v987 = vpop.permute.xlu0 %986
    %990 = vset.pattern.permute.xlu0 0
    %991 = vperm.xlu0 %990, %v925
    %v992 = vpop.permute.xlu0 %991
    %995 = vset.pattern.permute.xlu0 0
    %996 = vperm.xlu0 %995, %v926
    %v997 = vpop.permute.xlu0 %996
    %1000 = vset.pattern.permute.xlu0 0
    %1001 = vperm.xlu0 %1000, %v927
    %v1002 = vpop.permute.xlu0 %1001
    %1005 = vset.pattern.permute.xlu0 0
    %1006 = vperm.xlu0 %1005, %v928
    %v1007 = vpop.permute.xlu0 %1006
    %v1025 = vunpack.c.l.b16 %v889
    %v1026 = vunpack.c.l.b16 %v890
    %v1027 = vunpack.c.l.b16 %v891
    %v1028 = vunpack.c.l.b16 %v892
    %v1029 = vunpack.c.l.b16 %v893
    %v1030 = vunpack.c.l.b16 %v894
    %v1031 = vunpack.c.l.b16 %v895
    %v1032 = vunpack.c.l.b16 %v896
    %v1033 = vunpack.c.l.b16 %v897
    %v1034 = vunpack.c.l.b16 %v898
    %v1035 = vunpack.c.l.b16 %v899
    %v1036 = vunpack.c.l.b16 %v900
    %v1037 = vunpack.c.l.b16 %v901
    %v1038 = vunpack.c.l.b16 %v902
    %v1039 = vunpack.c.l.b16 %v903
    %v1040 = vunpack.c.l.b16 %v904
    %v1041 = vpack.c.b16 %v1026, %v1025
    %v1042 = vpack.c.b16 %v1028, %v1027
    %v1043 = vpack.c.b16 %v1030, %v1029
    %v1044 = vpack.c.b16 %v1032, %v1031
    %v1045 = vpack.c.b16 %v1034, %v1033
    %v1046 = vpack.c.b16 %v1036, %v1035
    %v1047 = vpack.c.b16 %v1038, %v1037
    %v1048 = vpack.c.b16 %v1040, %v1039
    %1057 = vmatpush.bf16.msra.mxu0 %v912
    %1058 = vmatpush.bf16.msra.mxu0 %v911
    %1059 = vmatpush.bf16.msra.mxu0 %v910
    %1060 = vmatpush.bf16.msra.mxu0 %v909
    %1061 = vmatpush.bf16.msra.mxu0 %v908
    %1062 = vmatpush.bf16.msra.mxu0 %v907
    %1063 = vmatpush.bf16.msra.mxu0 %v906
    %1064 = vmatpush.bf16.msra.mxu0 %v905
    %1065 = vmatmul.bf16.gmra.mxu0 %v1041
    %v1066 = vpop.f32.mrf.mxu0
    %v1067 = vadd.f32 %v932, %v1066
    %v1068 = vpop.f32.mrf.mxu0
    %v1069 = vadd.f32 %v937, %v1068
    %1070 = vmatmul.bf16.gmra.mxu0 %v1042
    %v1071 = vpop.f32.mrf.mxu0
    %v1072 = vadd.f32 %v942, %v1071
    %v1073 = vpop.f32.mrf.mxu0
    %v1074 = vadd.f32 %v947, %v1073
    %1075 = vmatmul.bf16.gmra.mxu0 %v1043
    %v1076 = vpop.f32.mrf.mxu0
    %v1077 = vadd.f32 %v952, %v1076
    %v1078 = vpop.f32.mrf.mxu0
    %v1079 = vadd.f32 %v957, %v1078
    %1080 = vmatmul.bf16.gmra.mxu0 %v1044
    %v1081 = vpop.f32.mrf.mxu0
    %v1082 = vadd.f32 %v962, %v1081
    %v1083 = vpop.f32.mrf.mxu0
    %v1084 = vadd.f32 %v967, %v1083
    %1085 = vmatmul.bf16.gmra.mxu0 %v1045
    %v1086 = vpop.f32.mrf.mxu0
    %v1087 = vadd.f32 %v972, %v1086
    %v1088 = vpop.f32.mrf.mxu0
    %v1089 = vadd.f32 %v977, %v1088
    %1090 = vmatmul.bf16.gmra.mxu0 %v1046
    %v1091 = vpop.f32.mrf.mxu0
    %v1092 = vadd.f32 %v982, %v1091
    %v1093 = vpop.f32.mrf.mxu0
    %v1094 = vadd.f32 %v987, %v1093
    %1095 = vmatmul.bf16.gmra.mxu0 %v1047
    %v1096 = vpop.f32.mrf.mxu0
    %v1097 = vadd.f32 %v992, %v1096
    %v1098 = vpop.f32.mrf.mxu0
    %v1099 = vadd.f32 %v997, %v1098
    %1100 = vmatmul.bf16.gmra.mxu0 %v1048
    %v1101 = vpop.f32.mrf.mxu0
    %v1102 = vadd.f32 %v1002, %v1101
    %v1103 = vpop.f32.mrf.mxu0
    %v1104 = vadd.f32 %v1007, %v1103
    %1105 = vdwg.mxu0
    %v1106 = vxor.u32 %v1067, 2147483648
    %v1107 = vxor.u32 %v1069, 2147483648
    %v1108 = vxor.u32 %v1072, 2147483648
    %v1109 = vxor.u32 %v1074, 2147483648
    %v1110 = vxor.u32 %v1077, 2147483648
    %v1111 = vxor.u32 %v1079, 2147483648
    %v1112 = vxor.u32 %v1082, 2147483648
    %v1113 = vxor.u32 %v1084, 2147483648
    %v1114 = vxor.u32 %v1087, 2147483648
    %v1115 = vxor.u32 %v1089, 2147483648
    %v1116 = vxor.u32 %v1092, 2147483648
    %v1117 = vxor.u32 %v1094, 2147483648
    %v1118 = vxor.u32 %v1097, 2147483648
    %v1119 = vxor.u32 %v1099, 2147483648
    %v1120 = vxor.u32 %v1102, 2147483648
    %v1121 = vxor.u32 %v1104, 2147483648
    %v1122 = vmul.f32 %v1106, 1.442695
    %v1123 = vpow.pop %v1122
    %v1124 = vmul.f32 %v1107, 1.442695
    %v1125 = vpow.pop %v1124
    %v1126 = vmul.f32 %v1108, 1.442695
    %v1127 = vpow.pop %v1126
    %v1128 = vmul.f32 %v1109, 1.442695
    %v1129 = vpow.pop %v1128
    %v1130 = vmul.f32 %v1110, 1.442695
    %v1131 = vpow.pop %v1130
    %v1132 = vmul.f32 %v1111, 1.442695
    %v1133 = vpow.pop %v1132
    %v1134 = vmul.f32 %v1112, 1.442695
    %v1135 = vpow.pop %v1134
    %v1136 = vmul.f32 %v1113, 1.442695
    %v1137 = vpow.pop %v1136
    %v1138 = vmul.f32 %v1114, 1.442695
    %v1139 = vpow.pop %v1138
    %v1140 = vmul.f32 %v1115, 1.442695
    %v1141 = vpow.pop %v1140
    %v1142 = vmul.f32 %v1116, 1.442695
    %v1143 = vpow.pop %v1142
    %v1144 = vmul.f32 %v1117, 1.442695
    %v1145 = vpow.pop %v1144
    %v1146 = vmul.f32 %v1118, 1.442695
    %v1147 = vpow.pop %v1146
    %v1148 = vmul.f32 %v1119, 1.442695
    %v1149 = vpow.pop %v1148
    %v1150 = vmul.f32 %v1120, 1.442695
    %v1151 = vpow.pop %v1150
    %v1152 = vmul.f32 %v1121, 1.442695
    %v1153 = vpow.pop %v1152
    %v1154 = vadd.f32 %v1123, 1.0
    %v1155 = vadd.f32 %v1125, 1.0
    %v1156 = vadd.f32 %v1127, 1.0
    %v1157 = vadd.f32 %v1129, 1.0
    %v1158 = vadd.f32 %v1131, 1.0
    %v1159 = vadd.f32 %v1133, 1.0
    %v1160 = vadd.f32 %v1135, 1.0
    %v1161 = vadd.f32 %v1137, 1.0
    %v1162 = vadd.f32 %v1139, 1.0
    %v1163 = vadd.f32 %v1141, 1.0
    %v1164 = vadd.f32 %v1143, 1.0
    %v1165 = vadd.f32 %v1145, 1.0
    %v1166 = vadd.f32 %v1147, 1.0
    %v1167 = vadd.f32 %v1149, 1.0
    %v1168 = vadd.f32 %v1151, 1.0
    %v1169 = vadd.f32 %v1153, 1.0
    %v1170 = vrcp.pop %v1154
    %v1171 = vmul.f32 %v1154, %v1170
    %v1172 = vsub.f32 1.0, %v1171
    %v1173 = vmul.f32 %v1170, %v1172
    %v1174 = vadd.f32 %v1170, %v1173
    %vm1175 = vweird.f32 %v1154
    %vm1176 = vweird.f32 %v1170
    %vm1177 = vmor %vm1175, %vm1176
    %v1178 = vsel %vm1177, %v1170, %v1174
    %v1179 = vand.u32 2147483647, %v1154
    %vm1180 = vcmp.eq.f32.partialorder %v1179, 8.507059e+37
    %v1181 = vand.u32 %v1154, 2147483648
    %v1182 = vor.u32 1.1754944e-38, %v1181
    %v1183 = vsel %vm1180, %v1182, %v1178
    %v1184 = vmul.f32 1.0, %v1183
    %v1185 = vrcp.pop %v1155
    %v1186 = vmul.f32 %v1155, %v1185
    %v1187 = vsub.f32 1.0, %v1186
    %v1188 = vmul.f32 %v1185, %v1187
    %v1189 = vadd.f32 %v1185, %v1188
    %vm1190 = vweird.f32 %v1155
    %vm1191 = vweird.f32 %v1185
    %vm1192 = vmor %vm1190, %vm1191
    %v1193 = vsel %vm1192, %v1185, %v1189
    %v1194 = vand.u32 2147483647, %v1155
    %vm1195 = vcmp.eq.f32.partialorder %v1194, 8.507059e+37
    %v1196 = vand.u32 %v1155, 2147483648
    %v1197 = vor.u32 1.1754944e-38, %v1196
    %v1198 = vsel %vm1195, %v1197, %v1193
    %v1199 = vmul.f32 1.0, %v1198
    %v1200 = vrcp.pop %v1156
    %v1201 = vmul.f32 %v1156, %v1200
    %v1202 = vsub.f32 1.0, %v1201
    %v1203 = vmul.f32 %v1200, %v1202
    %v1204 = vadd.f32 %v1200, %v1203
    %vm1205 = vweird.f32 %v1156
    %vm1206 = vweird.f32 %v1200
    %vm1207 = vmor %vm1205, %vm1206
    %v1208 = vsel %vm1207, %v1200, %v1204
    %v1209 = vand.u32 2147483647, %v1156
    %vm1210 = vcmp.eq.f32.partialorder %v1209, 8.507059e+37
    %v1211 = vand.u32 %v1156, 2147483648
    %v1212 = vor.u32 1.1754944e-38, %v1211
    %v1213 = vsel %vm1210, %v1212, %v1208
    %v1214 = vmul.f32 1.0, %v1213
    %v1215 = vrcp.pop %v1157
    %v1216 = vmul.f32 %v1157, %v1215
    %v1217 = vsub.f32 1.0, %v1216
    %v1218 = vmul.f32 %v1215, %v1217
    %v1219 = vadd.f32 %v1215, %v1218
    %vm1220 = vweird.f32 %v1157
    %vm1221 = vweird.f32 %v1215
    %vm1222 = vmor %vm1220, %vm1221
    %v1223 = vsel %vm1222, %v1215, %v1219
    %v1224 = vand.u32 2147483647, %v1157
    %vm1225 = vcmp.eq.f32.partialorder %v1224, 8.507059e+37
    %v1226 = vand.u32 %v1157, 2147483648
    %v1227 = vor.u32 1.1754944e-38, %v1226
    %v1228 = vsel %vm1225, %v1227, %v1223
    %v1229 = vmul.f32 1.0, %v1228
    %v1230 = vrcp.pop %v1158
    %v1231 = vmul.f32 %v1158, %v1230
    %v1232 = vsub.f32 1.0, %v1231
    %v1233 = vmul.f32 %v1230, %v1232
    %v1234 = vadd.f32 %v1230, %v1233
    %vm1235 = vweird.f32 %v1158
    %vm1236 = vweird.f32 %v1230
    %vm1237 = vmor %vm1235, %vm1236
    %v1238 = vsel %vm1237, %v1230, %v1234
    %v1239 = vand.u32 2147483647, %v1158
    %vm1240 = vcmp.eq.f32.partialorder %v1239, 8.507059e+37
    %v1241 = vand.u32 %v1158, 2147483648
    %v1242 = vor.u32 1.1754944e-38, %v1241
    %v1243 = vsel %vm1240, %v1242, %v1238
    %v1244 = vmul.f32 1.0, %v1243
    %v1245 = vrcp.pop %v1159
    %v1246 = vmul.f32 %v1159, %v1245
    %v1247 = vsub.f32 1.0, %v1246
    %v1248 = vmul.f32 %v1245, %v1247
    %v1249 = vadd.f32 %v1245, %v1248
    %vm1250 = vweird.f32 %v1159
    %vm1251 = vweird.f32 %v1245
    %vm1252 = vmor %vm1250, %vm1251
    %v1253 = vsel %vm1252, %v1245, %v1249
    %v1254 = vand.u32 2147483647, %v1159
    %vm1255 = vcmp.eq.f32.partialorder %v1254, 8.507059e+37
    %v1256 = vand.u32 %v1159, 2147483648
    %v1257 = vor.u32 1.1754944e-38, %v1256
    %v1258 = vsel %vm1255, %v1257, %v1253
    %v1259 = vmul.f32 1.0, %v1258
    %v1260 = vrcp.pop %v1160
    %v1261 = vmul.f32 %v1160, %v1260
    %v1262 = vsub.f32 1.0, %v1261
    %v1263 = vmul.f32 %v1260, %v1262
    %v1264 = vadd.f32 %v1260, %v1263
    %vm1265 = vweird.f32 %v1160
    %vm1266 = vweird.f32 %v1260
    %vm1267 = vmor %vm1265, %vm1266
    %v1268 = vsel %vm1267, %v1260, %v1264
    %v1269 = vand.u32 2147483647, %v1160
    %vm1270 = vcmp.eq.f32.partialorder %v1269, 8.507059e+37
    %v1271 = vand.u32 %v1160, 2147483648
    %v1272 = vor.u32 1.1754944e-38, %v1271
    %v1273 = vsel %vm1270, %v1272, %v1268
    %v1274 = vmul.f32 1.0, %v1273
    %v1275 = vrcp.pop %v1161
    %v1276 = vmul.f32 %v1161, %v1275
    %v1277 = vsub.f32 1.0, %v1276
    %v1278 = vmul.f32 %v1275, %v1277
    %v1279 = vadd.f32 %v1275, %v1278
    %vm1280 = vweird.f32 %v1161
    %vm1281 = vweird.f32 %v1275
    %vm1282 = vmor %vm1280, %vm1281
    %v1283 = vsel %vm1282, %v1275, %v1279
    %v1284 = vand.u32 2147483647, %v1161
    %vm1285 = vcmp.eq.f32.partialorder %v1284, 8.507059e+37
    %v1286 = vand.u32 %v1161, 2147483648
    %v1287 = vor.u32 1.1754944e-38, %v1286
    %v1288 = vsel %vm1285, %v1287, %v1283
    %v1289 = vmul.f32 1.0, %v1288
    %v1290 = vrcp.pop %v1162
    %v1291 = vmul.f32 %v1162, %v1290
    %v1292 = vsub.f32 1.0, %v1291
    %v1293 = vmul.f32 %v1290, %v1292
    %v1294 = vadd.f32 %v1290, %v1293
    %vm1295 = vweird.f32 %v1162
    %vm1296 = vweird.f32 %v1290
    %vm1297 = vmor %vm1295, %vm1296
    %v1298 = vsel %vm1297, %v1290, %v1294
    %v1299 = vand.u32 2147483647, %v1162
    %vm1300 = vcmp.eq.f32.partialorder %v1299, 8.507059e+37
    %v1301 = vand.u32 %v1162, 2147483648
    %v1302 = vor.u32 1.1754944e-38, %v1301
    %v1303 = vsel %vm1300, %v1302, %v1298
    %v1304 = vmul.f32 1.0, %v1303
    %v1305 = vrcp.pop %v1163
    %v1306 = vmul.f32 %v1163, %v1305
    %v1307 = vsub.f32 1.0, %v1306
    %v1308 = vmul.f32 %v1305, %v1307
    %v1309 = vadd.f32 %v1305, %v1308
    %vm1310 = vweird.f32 %v1163
    %vm1311 = vweird.f32 %v1305
    %vm1312 = vmor %vm1310, %vm1311
    %v1313 = vsel %vm1312, %v1305, %v1309
    %v1314 = vand.u32 2147483647, %v1163
    %vm1315 = vcmp.eq.f32.partialorder %v1314, 8.507059e+37
    %v1316 = vand.u32 %v1163, 2147483648
    %v1317 = vor.u32 1.1754944e-38, %v1316
    %v1318 = vsel %vm1315, %v1317, %v1313
    %v1319 = vmul.f32 1.0, %v1318
    %v1320 = vrcp.pop %v1164
    %v1321 = vmul.f32 %v1164, %v1320
    %v1322 = vsub.f32 1.0, %v1321
    %v1323 = vmul.f32 %v1320, %v1322
    %v1324 = vadd.f32 %v1320, %v1323
    %vm1325 = vweird.f32 %v1164
    %vm1326 = vweird.f32 %v1320
    %vm1327 = vmor %vm1325, %vm1326
    %v1328 = vsel %vm1327, %v1320, %v1324
    %v1329 = vand.u32 2147483647, %v1164
    %vm1330 = vcmp.eq.f32.partialorder %v1329, 8.507059e+37
    %v1331 = vand.u32 %v1164, 2147483648
    %v1332 = vor.u32 1.1754944e-38, %v1331
    %v1333 = vsel %vm1330, %v1332, %v1328
    %v1334 = vmul.f32 1.0, %v1333
    %v1335 = vrcp.pop %v1165
    %v1336 = vmul.f32 %v1165, %v1335
    %v1337 = vsub.f32 1.0, %v1336
    %v1338 = vmul.f32 %v1335, %v1337
    %v1339 = vadd.f32 %v1335, %v1338
    %vm1340 = vweird.f32 %v1165
    %vm1341 = vweird.f32 %v1335
    %vm1342 = vmor %vm1340, %vm1341
    %v1343 = vsel %vm1342, %v1335, %v1339
    %v1344 = vand.u32 2147483647, %v1165
    %vm1345 = vcmp.eq.f32.partialorder %v1344, 8.507059e+37
    %v1346 = vand.u32 %v1165, 2147483648
    %v1347 = vor.u32 1.1754944e-38, %v1346
    %v1348 = vsel %vm1345, %v1347, %v1343
    %v1349 = vmul.f32 1.0, %v1348
    %v1350 = vrcp.pop %v1166
    %v1351 = vmul.f32 %v1166, %v1350
    %v1352 = vsub.f32 1.0, %v1351
    %v1353 = vmul.f32 %v1350, %v1352
    %v1354 = vadd.f32 %v1350, %v1353
    %vm1355 = vweird.f32 %v1166
    %vm1356 = vweird.f32 %v1350
    %vm1357 = vmor %vm1355, %vm1356
    %v1358 = vsel %vm1357, %v1350, %v1354
    %v1359 = vand.u32 2147483647, %v1166
    %vm1360 = vcmp.eq.f32.partialorder %v1359, 8.507059e+37
    %v1361 = vand.u32 %v1166, 2147483648
    %v1362 = vor.u32 1.1754944e-38, %v1361
    %v1363 = vsel %vm1360, %v1362, %v1358
    %v1364 = vmul.f32 1.0, %v1363
    %v1365 = vrcp.pop %v1167
    %v1366 = vmul.f32 %v1167, %v1365
    %v1367 = vsub.f32 1.0, %v1366
    %v1368 = vmul.f32 %v1365, %v1367
    %v1369 = vadd.f32 %v1365, %v1368
    %vm1370 = vweird.f32 %v1167
    %vm1371 = vweird.f32 %v1365
    %vm1372 = vmor %vm1370, %vm1371
    %v1373 = vsel %vm1372, %v1365, %v1369
    %v1374 = vand.u32 2147483647, %v1167
    %vm1375 = vcmp.eq.f32.partialorder %v1374, 8.507059e+37
    %v1376 = vand.u32 %v1167, 2147483648
    %v1377 = vor.u32 1.1754944e-38, %v1376
    %v1378 = vsel %vm1375, %v1377, %v1373
    %v1379 = vmul.f32 1.0, %v1378
    %v1380 = vrcp.pop %v1168
    %v1381 = vmul.f32 %v1168, %v1380
    %v1382 = vsub.f32 1.0, %v1381
    %v1383 = vmul.f32 %v1380, %v1382
    %v1384 = vadd.f32 %v1380, %v1383
    %vm1385 = vweird.f32 %v1168
    %vm1386 = vweird.f32 %v1380
    %vm1387 = vmor %vm1385, %vm1386
    %v1388 = vsel %vm1387, %v1380, %v1384
    %v1389 = vand.u32 2147483647, %v1168
    %vm1390 = vcmp.eq.f32.partialorder %v1389, 8.507059e+37
    %v1391 = vand.u32 %v1168, 2147483648
    %v1392 = vor.u32 1.1754944e-38, %v1391
    %v1393 = vsel %vm1390, %v1392, %v1388
    %v1394 = vmul.f32 1.0, %v1393
    %v1395 = vrcp.pop %v1169
    %v1396 = vmul.f32 %v1169, %v1395
    %v1397 = vsub.f32 1.0, %v1396
    %v1398 = vmul.f32 %v1395, %v1397
    %v1399 = vadd.f32 %v1395, %v1398
    %vm1400 = vweird.f32 %v1169
    %vm1401 = vweird.f32 %v1395
    %vm1402 = vmor %vm1400, %vm1401
    %v1403 = vsel %vm1402, %v1395, %v1399
    %v1404 = vand.u32 2147483647, %v1169
    %vm1405 = vcmp.eq.f32.partialorder %v1404, 8.507059e+37
    %v1406 = vand.u32 %v1169, 2147483648
    %v1407 = vor.u32 1.1754944e-38, %v1406
    %v1408 = vsel %vm1405, %v1407, %v1403
    %v1409 = vmul.f32 1.0, %v1408
    %v1410 = vld [vmem:[%s7] sm:$0x3]
    %v1411 = vpack.c.bf16 %v1199, %v1184
    %v1412 = vpack.c.bf16 %v1229, %v1214
    %v1413 = vpack.c.bf16 %v1259, %v1244
    %v1414 = vpack.c.bf16 %v1289, %v1274
    %v1415 = vpack.c.bf16 %v1319, %v1304
    %v1416 = vpack.c.bf16 %v1349, %v1334
    %v1417 = vpack.c.bf16 %v1379, %v1364
    %v1418 = vpack.c.bf16 %v1409, %v1394
    %v1419 = vld [vmem:[%s8] sm:$0x7]
    %1421 = vset.pattern.permute.xlu0 0
    %1422 = vperm.xlu0 %1421, %v1419
    %v1423 = vpop.permute.xlu0 %1422
    %1425 = vmatpush.bf16.msra.mxu0 %v1418
    %1426 = vmatpush.bf16.msra.mxu0 %v1417
    %1427 = vmatpush.bf16.msra.mxu0 %v1416
    %1428 = vmatpush.bf16.msra.mxu0 %v1415
    %1429 = vmatpush.bf16.msra.mxu0 %v1414
    %1430 = vmatpush.bf16.msra.mxu0 %v1413
    %1431 = vmatpush.bf16.msra.mxu0 %v1412
    %1432 = vmatpush.bf16.msra.mxu0 %v1411
    %1433 = vmatmul.bf16.gmra.mxu0 %v1410
    %v1434 = vpop.f32.mrf.mxu0
    %v1435 = vadd.f32 %v1423, %v1434
    %v1436 = vpop.f32.mrf.mxu0
    %1437 = vdwg.mxu0
    %v1438 = vtanh.pop %v1435
    %v1439 = vadd.f32 %v1438, %v33
    %vm1440 = vcmask 59392
    %1441 = vst.msk [vmem:[#allocation2] sm:$0x7] %vm1440, %v1439
    // Predicated region
    $region38: #{dreamer_forward_t.1} parent=1 // pred_check
      _
    $region39: #{dreamer_forward_t.1} parent=1 // pred_check_branch
      %1443 = sbr.rel (0) target = $region41
    $region40: #{dreamer_forward_t.1} parent=1 // pred_region
      %1445 = vsyncadd [#allocation3], 0
      %s1447 = sshll.u32 [#allocation2], 4
      %s1448 = int_to_ptr.vmem [resolvable:$true] %s1447
      %s1449 = sshll.u32 %s9, 4
      %s1450 = int_to_ptr.hbm [resolvable:$true] %s1449
      %1452 = dma.vmem_to_hbm [thread:$0]  %s1448, 64, %s1450, [#allocation3]
    $region41: #{dreamer_forward_t.1} parent=1 // pred_fallthru
      _
    // Predicated region
    $region42: #{dreamer_forward_t.1} parent=1 // pred_check
      _
    $region43: #{dreamer_forward_t.1} parent=1 // pred_check_branch
      %1454 = sbr.rel (0) target = $region45
    $region44: #{dreamer_forward_t.1} parent=1 // pred_region
      %1456 = dma.done [#allocation3], 64
    $region45: #{dreamer_forward_t.1} parent=1 // pred_fallthru
      _
    %1457 = vsyncpa [#allocation3], 1

</llo_original>
